<compile_context>
chip_gen: v7x
topology: tpu7x:2x2x1
jax: 0.10.0
libtpu: 0.0.40
codegen_flags: <defaults>
</compile_context>

<pallas_src>
import functools

import jax
import jax.numpy as jnp
from jax.experimental import pallas as pl
from jax.experimental.pallas import tpu as pltpu

EPS = 1e-5
LANE = 128                       # pad K / O to multiples of 128 (lane-dense, MXU width)
ROW_TILE = 512                   # pixels (N*H*W rows) per grid step
VMEM_LIMIT = 48 * 1024 * 1024    # fits v7x (64 MiB/TC) with headroom; bigger bursts on v5e/v6e


# --------------------------------------------------------------------------
# small helpers
# --------------------------------------------------------------------------
def _round_up(x, m):
    return (x + m - 1) // m * m


def _largest_divisor(n, cap):
    d = max(1, min(n, cap))
    while n % d:
        d -= 1
    return d


def _pad2d(a, rows, cols):
    r, c = a.shape
    return jnp.pad(a, ((0, rows - r), (0, cols - c)))


def _pad_vec(v, cols):
    v = v.astype(jnp.float32).reshape(-1)
    return jnp.pad(v, (0, cols - v.shape[0]))


# --------------------------------------------------------------------------
# Pallas kernels
# --------------------------------------------------------------------------
def _upsample_kernel(bl_ref, rt_ref, x_ref, o_ref):
    # Bilinear (align_corners=True) as two batched matmuls per block of bc planes:
    #   width:  (bc*h, w) @ (w, w2)
    #   height: kron(I_bc, L) (bc*h2, bc*h) @ (bc*h, w2)
    bc, h, w = x_ref.shape
    h2, w2 = o_ref.shape[1], o_ref.shape[2]
    x = x_ref[...].reshape(bc * h, w)
    t = jnp.dot(x, rt_ref[...], preferred_element_type=jnp.float32)      # (bc*h,  w2)
    u = jnp.dot(bl_ref[...], t, preferred_element_type=jnp.float32)      # (bc*h2, w2)
    o_ref[...] = u.reshape(bc, h2, w2).astype(o_ref.dtype)


def _stat_rows(vals, total_rows):
    # Stack [sum, sumsq] per value, zero-pad to `total_rows` rows (sublane-aligned).
    rows = []
    for v in vals:
        rows.append(jnp.sum(v, axis=0, keepdims=True))
        rows.append(jnp.sum(v * v, axis=0, keepdims=True))
    nzero = total_rows - len(rows)
    if nzero:
        rows.append(jnp.zeros((nzero, vals[0].shape[1]), jnp.float32))
    return jnp.concatenate(rows, axis=0)


def _mm_stats_kernel(x_ref, w_ref, b_ref, y_ref, stats_ref, *, tm, rows_valid, mask_last):
    # pass 1: y = x @ w + b (bf16 operands, f32 accumulate), write y tile in bf16,
    # and emit per-tile partial per-channel sum / sum-of-squares (f32, from the
    # f32 accumulator) to this tile's own stats block -> grid axis stays "parallel".
    i = pl.program_id(0)
    acc = jnp.dot(x_ref[...], w_ref[...], preferred_element_type=jnp.float32) + b_ref[...]
    y_ref[...] = acc.astype(y_ref.dtype)
    stats_ref[...] = _stat_rows([acc], stats_ref.shape[0])
    if mask_last:
        # Only the last tile can contain padded rows; mask them out of the stats there.
        @pl.when(i == pl.num_programs(0) - 1)
        def _():
            rid = i * tm + jax.lax.broadcasted_iota(jnp.int32, acc.shape, 0)
            accm = jnp.where(rid < rows_valid, acc, 0.0)
            stats_ref[...] = _stat_rows([accm], stats_ref.shape[0])


def _dual_mm_stats_kernel(p_ref, x_ref, w2_ref, b2_ref, wid_ref, bid_ref,
                          y2_ref, yid_ref, stats_ref, *, tm, rows_valid, mask_last):
    # fused pass 1 for the second 3x3 conv and the 1x1 identity conv on one row tile.
    i = pl.program_id(0)
    a2 = jnp.dot(p_ref[...], w2_ref[...], preferred_element_type=jnp.float32) + b2_ref[...]
    aid = jnp.dot(x_ref[...], wid_ref[...], preferred_element_type=jnp.float32) + bid_ref[...]
    y2_ref[...] = a2.astype(y2_ref.dtype)
    yid_ref[...] = aid.astype(yid_ref.dtype)
    stats_ref[...] = _stat_rows([a2, aid], stats_ref.shape[0])
    if mask_last:
        @pl.when(i == pl.num_programs(0) - 1)
        def _():
            rid = i * tm + jax.lax.broadcasted_iota(jnp.int32, a2.shape, 0)
            valid = rid < rows_valid
            stats_ref[...] = _stat_rows([jnp.where(valid, a2, 0.0),
                                         jnp.where(valid, aid, 0.0)],
                                        stats_ref.shape[0])


def _affine_relu_kernel(y_ref, sc_ref, sh_ref, o_ref, *, relu):
    # pass 2: out = y*scale + shift (+ReLU); scale/shift precomputed from global stats.
    out = y_ref[...].astype(jnp.float32) * sc_ref[...] + sh_ref[...]
    if relu:
        out = jnp.maximum(out, 0.0)
    o_ref[...] = out.astype(o_ref.dtype)


def _dual_affine_add_relu_kernel(y2_ref, yid_ref, sc2_ref, sh2_ref,
                                 scid_ref, shid_ref, o_ref):
    # fused pass 2: ReLU( BN2(y2) + BNid(yid) ) as two FMAs + add + ReLU per row tile.
    a = y2_ref[...].astype(jnp.float32) * sc2_ref[...] + sh2_ref[...]
    b = yid_ref[...].astype(jnp.float32) * scid_ref[...] + shid_ref[...]
    o_ref[...] = jnp.maximum(a + b, 0.0).astype(o_ref.dtype)


# --------------------------------------------------------------------------
# Kernel wrappers
# --------------------------------------------------------------------------
def bilinear_matrix(n_in, n_out):
    """Interpolation matrix matching torch Upsample(bilinear, align_corners=True)."""
    if n_in == 1:
        return jnp.ones((n_out, 1), jnp.float32)
    src = jnp.arange(n_out, dtype=jnp.float32) * (n_in - 1) / (n_out - 1)
    lo = jnp.clip(jnp.floor(src).astype(jnp.int32), 0, n_in - 2)
    frac = src - lo.astype(jnp.float32)
    m = jnp.zeros((n_out, n_in), jnp.float32)
    rows = jnp.arange(n_out)
    m = m.at[rows, lo].set(1.0 - frac)
    m = m.at[rows, lo + 1].add(frac)
    return m


def upsample_bilinear_pallas(x_nchw, out_dtype=jnp.bfloat16):
    n, c, h, w = x_nchw.shape
    h2, w2 = 2 * h, 2 * w
    planes = n * c
    bc = _largest_divisor(planes, max(1, 256 // h))     # cap bc*h so kron matrix stays small
    lmat = bilinear_matrix(h, h2)                       # (h2, h)
    bl = jnp.kron(jnp.eye(bc, dtype=jnp.float32), lmat)  # block-diagonal (bc*h2, bc*h)
    rt = bilinear_matrix(w, w2).T                       # (w, w2)
    x = x_nchw.reshape(planes, h, w).astype(jnp.float32)
    out = pl.pallas_call(
        _upsample_kernel,
        out_shape=jax.ShapeDtypeStruct((planes, h2, w2), out_dtype),
        grid=(planes // bc,),
        in_specs=[pl.BlockSpec((bc * h2, bc * h), lambda i: (0, 0)),
                  pl.BlockSpec((w, w2), lambda i: (0, 0)),
                  pl.BlockSpec((bc, h, w), lambda i: (i, 0, 0))],
        out_specs=pl.BlockSpec((bc, h2, w2), lambda i: (i, 0, 0)),
        compiler_params=pltpu.CompilerParams(
            dimension_semantics=("parallel",),
            vmem_limit_bytes=VMEM_LIMIT),
    )(bl, rt, x)
    return out.reshape(n, c, h2, w2)


def conv_bn_stage(x2d, w_ko, bias, gamma, beta, *, relu, tm=ROW_TILE,
                  out_dtype=jnp.bfloat16):
    """y = BN_train(x2d @ w_ko + bias) (+ReLU). Row-tiled, two-pass BN, bf16 intermediates."""
    R, K = x2d.shape
    O = w_ko.shape[1]
    Kp = _round_up(K, LANE)
    Op = _round_up(O, LANE)
    tm = min(tm, _round_up(R, 8))
    Rp = _round_up(R, tm)
    nrt = Rp // tm
    mask_last = Rp != R

    xb = _pad2d(x2d.astype(jnp.bfloat16), Rp, Kp)
    wb = _pad2d(w_ko.astype(jnp.bfloat16), Kp, Op)
    bp = _pad_vec(bias, Op).reshape(1, Op)

    y, pstats = pl.pallas_call(
        functools.partial(_mm_stats_kernel, tm=tm, rows_valid=R, mask_last=mask_last),
        out_shape=(jax.ShapeDtypeStruct((Rp, Op), jnp.bfloat16),
                   jax.ShapeDtypeStruct((nrt, 8, Op), jnp.float32)),
        grid=(nrt,),
        in_specs=[pl.BlockSpec((tm, Kp), lambda i: (i, 0)),
                  pl.BlockSpec((Kp, Op), lambda i: (0, 0)),
                  pl.BlockSpec((1, Op), lambda i: (0, 0))],
        out_specs=[pl.BlockSpec((tm, Op), lambda i: (i, 0)),
                   pl.BlockSpec((None, 8, Op), lambda i: (i, 0, 0))],
        compiler_params=pltpu.CompilerParams(
            dimension_semantics=("parallel",),        # per-tile partials -> no revisits
            vmem_limit_bytes=VMEM_LIMIT),
    )(xb, wb, bp)

    # Tiny XLA-side cross-tile reduction + BN scale/shift precompute (f32).
    # TODO(synk): E[x^2]-E[x]^2 in f32 can cancel for huge pixel counts; Welford partials
    #             would be the robust fix.
    sums = jnp.sum(pstats, axis=0)                     # (8, Op)
    mu = sums[0] / R
    var = jnp.maximum(sums[1] / R - mu * mu, 0.0)
    scale = _pad_vec(gamma, Op) * jax.lax.rsqrt(var + EPS)
    shift = _pad_vec(beta, Op) - mu * scale

    out = pl.pallas_call(
        functools.partial(_affine_relu_kernel, relu=relu),
        out_shape=jax.ShapeDtypeStruct((Rp, Op), out_dtype),
        grid=(nrt,),
        in_specs=[pl.BlockSpec((tm, Op), lambda i: (i, 0)),
                  pl.BlockSpec((1, Op), lambda i: (0, 0)),
                  pl.BlockSpec((1, Op), lambda i: (0, 0))],
        out_specs=pl.BlockSpec((tm, Op), lambda i: (i, 0)),
        compiler_params=pltpu.CompilerParams(
            dimension_semantics=("parallel",),
            vmem_limit_bytes=VMEM_LIMIT),
    )(y, scale.reshape(1, Op), shift.reshape(1, Op))
    return out[:R, :O]


def dual_conv_bn_stage(p2d, x2d, w2_ko, b2, g2, be2, wid_ko, bid, gid, beid,
                       *, tm=ROW_TILE, out_dtype=jnp.float32):
    """ReLU( BN_train(p2d @ w2 + b2) + BN_train(x2d @ wid + bid) ). Row-tiled, 2-pass."""
    R, K2 = p2d.shape
    _, Kid = x2d.shape
    O = w2_ko.shape[1]
    K2p = _round_up(K2, LANE)
    Kidp = _round_up(Kid, LANE)
    Op = _round_up(O, LANE)
    tm = min(tm, _round_up(R, 8))
    Rp = _round_up(R, tm)
    nrt = Rp // tm
    mask_last = Rp != R

    pb = _pad2d(p2d.astype(jnp.bfloat16), Rp, K2p)
    xb = _pad2d(x2d.astype(jnp.bfloat16), Rp, Kidp)
    w2b = _pad2d(w2_ko.astype(jnp.bfloat16), K2p, Op)
    widb = _pad2d(wid_ko.astype(jnp.bfloat16), Kidp, Op)
    b2p = _pad_vec(b2, Op).reshape(1, Op)
    bidp = _pad_vec(bid, Op).reshape(1, Op)

    y2, yid, pstats = pl.pallas_call(
        functools.partial(_dual_mm_stats_kernel, tm=tm, rows_valid=R, mask_last=mask_last),
        out_shape=(jax.ShapeDtypeStruct((Rp, Op), jnp.bfloat16),
                   jax.ShapeDtypeStruct((Rp, Op), jnp.bfloat16),
                   jax.ShapeDtypeStruct((nrt, 8, Op), jnp.float32)),
        grid=(nrt,),
        in_specs=[pl.BlockSpec((tm, K2p), lambda i: (i, 0)),
                  pl.BlockSpec((tm, Kidp), lambda i: (i, 0)),
                  pl.BlockSpec((K2p, Op), lambda i: (0, 0)),
                  pl.BlockSpec((1, Op), lambda i: (0, 0)),
                  pl.BlockSpec((Kidp, Op), lambda i: (0, 0)),
                  pl.BlockSpec((1, Op), lambda i: (0, 0))],
        out_specs=[pl.BlockSpec((tm, Op), lambda i: (i, 0)),
                   pl.BlockSpec((tm, Op), lambda i: (i, 0)),
                   pl.BlockSpec((None, 8, Op), lambda i: (i, 0, 0))],
        compiler_params=pltpu.CompilerParams(
            dimension_semantics=("parallel",),
            vmem_limit_bytes=VMEM_LIMIT),
    )(pb, xb, w2b, b2p, widb, bidp)

    sums = jnp.sum(pstats, axis=0)                     # (8, Op)
    mu2 = sums[0] / R
    var2 = jnp.maximum(sums[1] / R - mu2 * mu2, 0.0)
    muid = sums[2] / R
    varid = jnp.maximum(sums[3] / R - muid * muid, 0.0)
    sc2 = _pad_vec(g2, Op) * jax.lax.rsqrt(var2 + EPS)
    sh2 = _pad_vec(be2, Op) - mu2 * sc2
    scid = _pad_vec(gid, Op) * jax.lax.rsqrt(varid + EPS)
    shid = _pad_vec(beid, Op) - muid * scid

    out = pl.pallas_call(
        _dual_affine_add_relu_kernel,
        out_shape=jax.ShapeDtypeStruct((Rp, Op), out_dtype),
        grid=(nrt,),
        in_specs=[pl.BlockSpec((tm, Op), lambda i: (i, 0)),
                  pl.BlockSpec((tm, Op), lambda i: (i, 0)),
                  pl.BlockSpec((1, Op), lambda i: (0, 0)),
                  pl.BlockSpec((1, Op), lambda i: (0, 0)),
                  pl.BlockSpec((1, Op), lambda i: (0, 0)),
                  pl.BlockSpec((1, Op), lambda i: (0, 0))],
        out_specs=pl.BlockSpec((tm, Op), lambda i: (i, 0)),
        compiler_params=pltpu.CompilerParams(
            dimension_semantics=("parallel",),
            vmem_limit_bytes=VMEM_LIMIT),
    )(y2, yid, sc2.reshape(1, Op), sh2.reshape(1, Op),
      scid.reshape(1, Op), shid.reshape(1, Op))
    return out[:R, :O]


# --------------------------------------------------------------------------
# Glue (reshapes / im2col / param packing) — still XLA-side, in bf16.
# --------------------------------------------------------------------------
def im2col3x3(x_nhwc):
    n, h, w, c = x_nhwc.shape
    xp = jnp.pad(x_nhwc, ((0, 0), (1, 1), (1, 1), (0, 0)))
    patches = [xp[:, kh:kh + h, kw:kw + w, :] for kh in range(3) for kw in range(3)]
    return jnp.concatenate(patches, axis=-1).reshape(n * h * w, 9 * c)


def w3x3_to_mat(w_oihw):        # (O, I, 3, 3) -> (9*I, O), order (kh, kw, i)
    return jnp.transpose(w_oihw, (2, 3, 1, 0)).reshape(-1, w_oihw.shape[0])


def w1x1_to_mat(w_oihw):        # (O, I, 1, 1) -> (I, O)
    return jnp.transpose(w_oihw[:, :, 0, 0], (1, 0))


def up_forward(params, x1, x2):
    """Up.forward(x1, x2) with attn=False.  Inputs/outputs are NCHW float32."""
    x1u = upsample_bilinear_pallas(x1)                      # bf16 NCHW
    diff_y = x2.shape[2] - x1u.shape[2]
    diff_x = x2.shape[3] - x1u.shape[3]
    x1u = jnp.pad(
        x1u,
        ((0, 0), (0, 0),
         (diff_y // 2, diff_y - diff_y // 2),
         (diff_x // 2, diff_x - diff_x // 2)))
    x = jnp.concatenate([x2.astype(jnp.bfloat16), x1u], axis=1)   # NCHW concat, [x2, x1]

    x_nhwc = jnp.transpose(x, (0, 2, 3, 1))
    n, h, w, c = x_nhwc.shape
    x2d = x_nhwc.reshape(n * h * w, c)

    # DoubleConv: conv3x3 -> BN -> ReLU -> conv3x3 -> BN, plus 1x1 identity -> BN, add, ReLU
    p1 = im2col3x3(x_nhwc)
    h1 = conv_bn_stage(p1, w3x3_to_mat(params["w1"]), params["b1"],
                       params["g1"], params["be1"], relu=True,
                       out_dtype=jnp.bfloat16)              # bf16 feeds next matmul
    p2 = im2col3x3(h1.reshape(n, h, w, -1))
    out2d = dual_conv_bn_stage(p2, x2d,
                               w3x3_to_mat(params["w2"]), params["b2"],
                               params["g2"], params["be2"],
                               w1x1_to_mat(params["wid"]), params["bid"],
                               params["gid"], params["beid"])
    return jnp.transpose(out2d.reshape(n, h, w, -1), (0, 3, 1, 2)).astype(jnp.float32)


# --------------------------------------------------------------------------
# Pure-JAX reference (mirrors the kernels' bf16-operand / f32-accumulate convs)
# --------------------------------------------------------------------------
def up_forward_ref(params, x1, x2):
    n, c, h, w = x1.shape
    hi = jax.lax.Precision.HIGHEST
    lmat = bilinear_matrix(h, 2 * h)
    rmat_t = bilinear_matrix(w, 2 * w).T
    x1p = x1.reshape(n * c, h, w)
    t = jnp.einsum("Hh,phw->pHw", lmat, x1p, precision=hi)
    x1u = jnp.einsum("pHw,wW->pHW", t, rmat_t, precision=hi).reshape(n, c, 2 * h, 2 * w)
    dy = x2.shape[2] - x1u.shape[2]
    dx = x2.shape[3] - x1u.shape[3]
    x1u = jnp.pad(x1u, ((0, 0), (0, 0), (dy // 2, dy - dy // 2), (dx // 2, dx - dx // 2)))
    x = jnp.transpose(jnp.concatenate([x2, x1u], axis=1), (0, 2, 3, 1))   # NHWC

    def conv(xx, w_oihw, b):
        w_hwio = jnp.transpose(w_oihw, (2, 3, 1, 0)).astype(jnp.bfloat16)
        y = jax.lax.conv_general_dilated(
            xx.astype(jnp.bfloat16), w_hwio, (1, 1), "SAME",
            dimension_numbers=("NHWC", "HWIO", "NHWC"),
            preferred_element_type=jnp.float32)
        return y + b

    def bn(y, g, b):
        mu = y.mean(axis=(0, 1, 2), keepdims=True)
        var = ((y - mu) ** 2).mean(axis=(0, 1, 2), keepdims=True)
        return (y - mu) * jax.lax.rsqrt(var + EPS) * g + b

    h1 = jax.nn.relu(bn(conv(x, params["w1"], params["b1"]), params["g1"], params["be1"]))
    h2o = bn(conv(h1, params["w2"], params["b2"]), params["g2"], params["be2"])
    hid = bn(conv(x, params["wid"], params["bid"]), params["gid"], params["beid"])
    return jnp.transpose(jax.nn.relu(h2o + hid), (0, 3, 1, 2))


# --------------------------------------------------------------------------
if __name__ == "__main__":
    key = jax.random.PRNGKey(0)
    keys = jax.random.split(key, 16)

    in_ch1, in_ch2, out_ch = 4, 4, 8
    n, h, w = 2, 8, 8
    in_tot = in_ch1 + in_ch2

    x1 = jax.random.normal(keys[0], (n, in_ch1, h, w), jnp.float32)
    x2 = jax.random.normal(keys[1], (n, in_ch2, 2 * h, 2 * w), jnp.float32)

    def nrm(k, shape, s=0.1):
        return s * jax.random.normal(k, shape, jnp.float32)

    params = {
        # double_conv: conv3x3 -> BN -> ReLU -> conv3x3 -> BN
        "w1": nrm(keys[2], (out_ch, in_tot, 3, 3)), "b1": nrm(keys[3], (out_ch,)),
        "g1": 1.0 + nrm(keys[4], (out_ch,)),        "be1": nrm(keys[5], (out_ch,)),
        "w2": nrm(keys[6], (out_ch, out_ch, 3, 3)), "b2": nrm(keys[7], (out_ch,)),
        "g2": 1.0 + nrm(keys[8], (out_ch,)),        "be2": nrm(keys[9], (out_ch,)),
        # identity: conv1x1 -> BN
        "wid": nrm(keys[10], (out_ch, in_tot, 1, 1)), "bid": nrm(keys[11], (out_ch,)),
        "gid": 1.0 + nrm(keys[12], (out_ch,)),        "beid": nrm(keys[13], (out_ch,)),
    }

    out = jax.block_until_ready(up_forward(params, x1, x2))
    ref = jax.block_until_ready(up_forward_ref(params, x1, x2))

    assert out.shape == (n, out_ch, 2 * h, 2 * w), out.shape
    max_err = float(jnp.abs(out - ref).max())
    assert jnp.allclose(out, ref, atol=2e-2, rtol=2e-2), max_err

    print("KERNEL_OK")
</pallas_src>

<mosaic_0001>
module attributes {stable_mosaic.version = 11 : i64} {
  func.func @_upsample_kernel(%arg0: i32, %arg1: memref<128x64xf32, #tpu.memory_space<vmem>>, %arg2: memref<8x16xf32, #tpu.memory_space<vmem>>, %arg3: memref<8x8x8xf32, #tpu.memory_space<vmem>>, %arg4: memref<8x16x16xbf16, #tpu.memory_space<vmem>>) attributes {dimension_semantics = [#tpu.dimension_semantics<parallel>], iteration_bounds = array<i64: 1>, scalar_prefetch = 0 : i64, scratch_operands = 0 : i64, tpu.core_type = #tpu.core_type<tc>, window_params = [{pipeline_mode = #tpu.pipeline_mode<synchronous>, transform_indices = @transform_0, window_bounds = array<i64: 128, 64>}, {pipeline_mode = #tpu.pipeline_mode<synchronous>, transform_indices = @transform_1, window_bounds = array<i64: 8, 16>}, {transform_indices = @transform_2, window_bounds = array<i64: 8, 8, 8>}, {transform_indices = @transform_3, window_bounds = array<i64: 8, 16, 16>}]} {
    %c0 = arith.constant 0 : index
    %c0_0 = arith.constant 0 : index
    %c0_1 = arith.constant 0 : index
    %0 = vector.load %arg3[%c0, %c0_0, %c0_1] : memref<8x8x8xf32, #tpu.memory_space<vmem>>, vector<8x8x8xf32>
    %1 = vector.shape_cast %0 : vector<8x8x8xf32> to vector<64x8xf32>
    %c0_2 = arith.constant 0 : index
    %c0_3 = arith.constant 0 : index
    %2 = vector.load %arg2[%c0_2, %c0_3] : memref<8x16xf32, #tpu.memory_space<vmem>>, vector<8x16xf32>
    %cst = arith.constant dense<0.000000e+00> : vector<64x16xf32>
    %3 = tpu.matmul %1, %2, %cst {dimension_numbers = #tpu.dot_dimension_numbers<[1], [0], [0], [1], [0, 0, 1, 1], [], []>} : vector<64x8xf32>, vector<8x16xf32>, vector<64x16xf32> -> vector<64x16xf32>
    %c0_4 = arith.constant 0 : index
    %c0_5 = arith.constant 0 : index
    %4 = vector.load %arg1[%c0_4, %c0_5] : memref<128x64xf32, #tpu.memory_space<vmem>>, vector<128x64xf32>
    %cst_6 = arith.constant dense<0.000000e+00> : vector<128x16xf32>
    %5 = tpu.matmul %4, %3, %cst_6 {dimension_numbers = #tpu.dot_dimension_numbers<[1], [0], [0], [1], [0, 0, 1, 1], [], []>} : vector<128x64xf32>, vector<64x16xf32>, vector<128x16xf32> -> vector<128x16xf32>
    %6 = vector.shape_cast %5 : vector<128x16xf32> to vector<8x16x16xf32>
    %7 = arith.truncf %6 : vector<8x16x16xf32> to vector<8x16x16xbf16>
    %c0_7 = arith.constant 0 : index
    %c0_8 = arith.constant 0 : index
    %c0_9 = arith.constant 0 : index
    %8 = vector.load %arg4[%c0_7, %c0_8, %c0_9] : memref<8x16x16xbf16, #tpu.memory_space<vmem>>, vector<8x16x16xbf16>
    tpu.vector_store %arg4[%c0_7, %c0_8, %c0_9], %7 {strides = array<i32>} : memref<8x16x16xbf16, #tpu.memory_space<vmem>>, vector<8x16x16xbf16>,
    return
  }
  func.func @transform_0(%arg0: i32) -> (i32, i32) {
    %c0_i32 = arith.constant 0 : i32
    %c0_i32_0 = arith.constant 0 : i32
    %c0_i32_1 = arith.constant 0 : i32
    return %c0_i32, %c0_i32_0 : i32, i32
  }
  func.func @transform_1(%arg0: i32) -> (i32, i32) {
    %c0_i32 = arith.constant 0 : i32
    %c0_i32_0 = arith.constant 0 : i32
    %c0_i32_1 = arith.constant 0 : i32
    return %c0_i32, %c0_i32_0 : i32, i32
  }
  func.func @transform_2(%arg0: i32) -> (i32, i32, i32) {
    %c0_i32 = arith.constant 0 : i32
    %c0_i32_0 = arith.constant 0 : i32
    %c0_i32_1 = arith.constant 0 : i32
    return %arg0, %c0_i32, %c0_i32_0 : i32, i32, i32
  }
  func.func @transform_3(%arg0: i32) -> (i32, i32, i32) {
    %c0_i32 = arith.constant 0 : i32
    %c0_i32_0 = arith.constant 0 : i32
    %c0_i32_1 = arith.constant 0 : i32
    return %arg0, %c0_i32, %c0_i32_0 : i32, i32, i32
  }
}

</mosaic_0001>

<llo_original>
// kernel: tpu_custom_call.1
$region0: #{tpu_custom_call.1}
  #allocation0 [shape = 'u32[]', space=smem, size = 0x4, offset = 0x4, fixed_abs, tag = 'smem constant byte address 0x4 - core index']
  #allocation1 [shape = 'u32[144,128]{1,0:T(1,128)}', space=vmem, size = 0x12000, scoped, tag = 'internal scratch']
  %s0 = inlined_call_operand.vmem [shape: f32[128,64], index: 0, kind: input, shape index: {}]
  %s1 = inlined_call_operand.vmem [shape: f32[8,16], index: 1, kind: input, shape index: {}]
  %s2 = inlined_call_operand.vmem [shape: f32[8,8,8], index: 2, kind: input, shape index: {}]
  %s3 = inlined_call_operand.hbm [shape: bf16[8,16,16], index: 3, kind: output, shape index: {}]
  %s4 = sld [smem:[#allocation0]]
  $region22: #{tpu_custom_call.1} parent=0
    _
  %s6 = ssub.s32 1, %s4
  %s7 = scalar_select 0, %s6, %s4
  $region1: #{tpu_custom_call.1} parent=0
    #allocation2 [shape = 'u8[32768]{0}', space=vmem, size = 0x8000, scoped, tag = 'output window, operand 0, single buffered']
    #allocation3 [shape = 's32[1]{0}', space=sflag, size = 0x4, scoped, tag = 'scoped memory for tpu_custom_call.1']
    %8 = vsyncpa [#allocation3], 0
    // Predicated region
    $region2: #{tpu_custom_call.1} parent=1 // pred_check
      _
    $region3: #{tpu_custom_call.1} parent=1 // pred_check_branch
      %10 = sbr.rel (0) target = $region5
    $region4: #{tpu_custom_call.1} parent=1 // pred_region
      _
    $region5: #{tpu_custom_call.1} parent=1 // pred_fallthru
      _
    // Predicated region
    $region6: #{tpu_custom_call.1} parent=1 // pred_check
      _
    $region7: #{tpu_custom_call.1} parent=1 // pred_check_branch
      %12 = sbr.rel (0) target = $region9
    $region8: #{tpu_custom_call.1} parent=1 // pred_region
      _
    $region9: #{tpu_custom_call.1} parent=1 // pred_fallthru
      _
    // Predicated region
    $region10: #{tpu_custom_call.1} parent=1 // pred_check
      _
    $region11: #{tpu_custom_call.1} parent=1 // pred_check_branch
      %14 = sbr.rel (0) target = $region13
    $region12: #{tpu_custom_call.1} parent=1 // pred_region
      _
    $region13: #{tpu_custom_call.1} parent=1 // pred_fallthru
      _
    %v15 = vld [vmem:[%s2] sm:$0xff]
    %v16 = vld [vmem:[%s2 + $0x8] sm:$0xff]
    %v17 = vld [vmem:[%s2 + $0x10] sm:$0xff]
    %v18 = vld [vmem:[%s2 + $0x18] sm:$0xff]
    %v19 = vld [vmem:[%s2 + $0x20] sm:$0xff]
    %v20 = vld [vmem:[%s2 + $0x28] sm:$0xff]
    %v21 = vld [vmem:[%s2 + $0x30] sm:$0xff]
    %v22 = vld [vmem:[%s2 + $0x38] sm:$0xff]
    %v23 = vld [vmem:[%s1] sm:$0xff]
    %vm24 = vcmask 64512
    %v26 = vsel %vm24, %v15, 0
    %v29 = vsel %vm24, %v16, 0
    %v32 = vsel %vm24, %v17, 0
    %v35 = vsel %vm24, %v18, 0
    %v38 = vsel %vm24, %v19, 0
    %v41 = vsel %vm24, %v20, 0
    %v44 = vsel %vm24, %v21, 0
    %v47 = vsel %vm24, %v22, 0
    %49 = vmatprep.subr.mxu0 0.0
    %50 = vmatpush1.msra.mxu0 %v23
    %51 = vmatprep.subr.mxu0 0.0
    %52 = vmatpush1.msra.mxu0 0.0
    %53 = vmatprep.subr.mxu0 0.0
    %54 = vmatpush1.msra.mxu0 0.0
    %55 = vmatprep.subr.mxu0 0.0
    %56 = vmatpush1.msra.mxu0 0.0
    %57 = vmatprep.subr.mxu0 0.0
    %58 = vmatpush1.msra.mxu0 0.0
    %59 = vmatprep.subr.mxu0 0.0
    %60 = vmatpush1.msra.mxu0 0.0
    %61 = vmatprep.subr.mxu0 0.0
    %62 = vmatpush1.msra.mxu0 0.0
    %63 = vmatprep.subr.mxu0 0.0
    %64 = vmatpush1.msra.mxu0 0.0
    %65 = vmatprep.subr.mxu0 0.0
    %66 = vmatpush1.msra.mxu0 0.0
    %67 = vmatprep.subr.mxu0 0.0
    %68 = vmatpush1.msra.mxu0 0.0
    %69 = vmatprep.subr.mxu0 0.0
    %70 = vmatpush1.msra.mxu0 0.0
    %71 = vmatprep.subr.mxu0 0.0
    %72 = vmatpush1.msra.mxu0 0.0
    %73 = vmatprep.subr.mxu0 0.0
    %74 = vmatpush1.msra.mxu0 0.0
    %75 = vmatprep.subr.mxu0 0.0
    %76 = vmatpush1.msra.mxu0 0.0
    %77 = vmatprep.subr.mxu0 0.0
    %78 = vmatpush1.msra.mxu0 0.0
    %79 = vmatprep.subr.mxu0 0.0
    %80 = vmatpush1.msra.mxu0 0.0
    %81 = vmatprep.subr.mxu0 0.0
    %82 = vmatpush1.msra.mxu0 0.0
    %83 = vmatprep.subr.mxu0 0.0
    %84 = vmatpush1.msra.mxu0 0.0
    %85 = vmatprep.subr.mxu0 0.0
    %86 = vmatpush1.msra.mxu0 0.0
    %87 = vmatprep.subr.mxu0 0.0
    %88 = vmatpush1.msra.mxu0 0.0
    %89 = vmatprep.subr.mxu0 0.0
    %90 = vmatpush1.msra.mxu0 0.0
    %91 = vmatprep.subr.mxu0 0.0
    %92 = vmatpush1.msra.mxu0 0.0
    %93 = vmatprep.subr.mxu0 0.0
    %94 = vmatpush1.msra.mxu0 0.0
    %95 = vmatprep.subr.mxu0 0.0
    %96 = vmatpush1.msra.mxu0 0.0
    %97 = vmatprep.subr.mxu0 0.0
    %98 = vmatpush1.msra.mxu0 0.0
    %99 = vmatprep.subr.mxu0 0.0
    %100 = vmatpush1.msra.mxu0 0.0
    %101 = vmatprep.subr.mxu0 0.0
    %102 = vmatpush1.msra.mxu0 0.0
    %103 = vmatprep.subr.mxu0 0.0
    %104 = vmatpush1.msra.mxu0 0.0
    %105 = vmatprep.subr.mxu0 0.0
    %106 = vmatpush1.msra.mxu0 0.0
    %107 = vmatprep.subr.mxu0 0.0
    %108 = vmatpush1.msra.mxu0 0.0
    %109 = vmatprep.subr.mxu0 0.0
    %110 = vmatpush1.msra.mxu0 0.0
    %111 = vmatprep.subr.mxu0 0.0
    %112 = vmatpush1.msra.mxu0 0.0
    %113 = vmatprep.mubr.f32.mxu0 0.0
    %114 = vmatmul.mubr.f32.gmra.mrb[0].mxu0 %v26
    %v115 = vpop.f32.mrb[0].mxu0
    %v116 = vadd.f32 0.0, %v115
    %v117 = vpop.f32.mrb[0].mxu0
    %118 = vmatprep.mubr.f32.mxu0 0.0
    %119 = vmatmul.mubr.f32.gmra.mrb[0].mxu0 %v29
    %v120 = vpop.f32.mrb[0].mxu0
    %v121 = vadd.f32 0.0, %v120
    %v122 = vpop.f32.mrb[0].mxu0
    %123 = vmatprep.mubr.f32.mxu0 0.0
    %124 = vmatmul.mubr.f32.gmra.mrb[0].mxu0 %v32
    %v125 = vpop.f32.mrb[0].mxu0
    %v126 = vadd.f32 0.0, %v125
    %v127 = vpop.f32.mrb[0].mxu0
    %128 = vmatprep.mubr.f32.mxu0 0.0
    %129 = vmatmul.mubr.f32.gmra.mrb[0].mxu0 %v35
    %v130 = vpop.f32.mrb[0].mxu0
    %v131 = vadd.f32 0.0, %v130
    %v132 = vpop.f32.mrb[0].mxu0
    %133 = vmatprep.mubr.f32.mxu0 0.0
    %134 = vmatmul.mubr.f32.gmra.mrb[0].mxu0 %v38
    %v135 = vpop.f32.mrb[0].mxu0
    %v136 = vadd.f32 0.0, %v135
    %v137 = vpop.f32.mrb[0].mxu0
    %138 = vmatprep.mubr.f32.mxu0 0.0
    %139 = vmatmul.mubr.f32.gmra.mrb[0].mxu0 %v41
    %v140 = vpop.f32.mrb[0].mxu0
    %v141 = vadd.f32 0.0, %v140
    %v142 = vpop.f32.mrb[0].mxu0
    %143 = vmatprep.mubr.f32.mxu0 0.0
    %144 = vmatmul.mubr.f32.gmra.mrb[0].mxu0 %v44
    %v145 = vpop.f32.mrb[0].mxu0
    %v146 = vadd.f32 0.0, %v145
    %v147 = vpop.f32.mrb[0].mxu0
    %148 = vmatprep.mubr.f32.mxu0 0.0
    %149 = vmatmul.mubr.f32.gmra.mrb[0].mxu0 %v47
    %v150 = vpop.f32.mrb[0].mxu0
    %v151 = vadd.f32 0.0, %v150
    %v152 = vpop.f32.mrb[0].mxu0
    %153 = vdwg.mxu0
    %v154 = vld [vmem:[%s0] sm:$0xff]
    %v155 = vld [vmem:[%s0 + $0x8] sm:$0xff]
    %v156 = vld [vmem:[%s0 + $0x10] sm:$0xff]
    %v157 = vld [vmem:[%s0 + $0x18] sm:$0xff]
    %v158 = vld [vmem:[%s0 + $0x20] sm:$0xff]
    %v159 = vld [vmem:[%s0 + $0x28] sm:$0xff]
    %v160 = vld [vmem:[%s0 + $0x30] sm:$0xff]
    %v161 = vld [vmem:[%s0 + $0x38] sm:$0xff]
    %v162 = vld [vmem:[%s0 + $0x40] sm:$0xff]
    %v163 = vld [vmem:[%s0 + $0x48] sm:$0xff]
    %v164 = vld [vmem:[%s0 + $0x50] sm:$0xff]
    %v165 = vld [vmem:[%s0 + $0x58] sm:$0xff]
    %v166 = vld [vmem:[%s0 + $0x60] sm:$0xff]
    %v167 = vld [vmem:[%s0 + $0x68] sm:$0xff]
    %v168 = vld [vmem:[%s0 + $0x70] sm:$0xff]
    %v169 = vld [vmem:[%s0 + $0x78] sm:$0xff]
    %vm170 = vcmask 523264
    %v172 = vsel %vm170, %v154, 0
    %v175 = vsel %vm170, %v155, 0
    %v178 = vsel %vm170, %v156, 0
    %v181 = vsel %vm170, %v157, 0
    %v184 = vsel %vm170, %v158, 0
    %v187 = vsel %vm170, %v159, 0
    %v190 = vsel %vm170, %v160, 0
    %v193 = vsel %vm170, %v161, 0
    %v196 = vsel %vm170, %v162, 0
    %v199 = vsel %vm170, %v163, 0
    %v202 = vsel %vm170, %v164, 0
    %v205 = vsel %vm170, %v165, 0
    %v208 = vsel %vm170, %v166, 0
    %v211 = vsel %vm170, %v167, 0
    %v214 = vsel %vm170, %v168, 0
    %v217 = vsel %vm170, %v169, 0
    %219 = vmatprep.subr.mxu0 0.0
    %220 = vmatpush1.msra.mxu0 %v116
    %221 = vmatprep.subr.mxu0 0.0
    %222 = vmatpush1.msra.mxu0 %v121
    %223 = vmatprep.subr.mxu0 0.0
    %224 = vmatpush1.msra.mxu0 %v126
    %225 = vmatprep.subr.mxu0 0.0
    %226 = vmatpush1.msra.mxu0 %v131
    %227 = vmatprep.subr.mxu0 0.0
    %228 = vmatpush1.msra.mxu0 %v136
    %229 = vmatprep.subr.mxu0 0.0
    %230 = vmatpush1.msra.mxu0 %v141
    %231 = vmatprep.subr.mxu0 0.0
    %232 = vmatpush1.msra.mxu0 %v146
    %233 = vmatprep.subr.mxu0 0.0
    %234 = vmatpush1.msra.mxu0 %v151
    %235 = vmatprep.subr.mxu0 0.0
    %236 = vmatpush1.msra.mxu0 0.0
    %237 = vmatprep.subr.mxu0 0.0
    %238 = vmatpush1.msra.mxu0 0.0
    %239 = vmatprep.subr.mxu0 0.0
    %240 = vmatpush1.msra.mxu0 0.0
    %241 = vmatprep.subr.mxu0 0.0
    %242 = vmatpush1.msra.mxu0 0.0
    %243 = vmatprep.subr.mxu0 0.0
    %244 = vmatpush1.msra.mxu0 0.0
    %245 = vmatprep.subr.mxu0 0.0
    %246 = vmatpush1.msra.mxu0 0.0
    %247 = vmatprep.subr.mxu0 0.0
    %248 = vmatpush1.msra.mxu0 0.0
    %249 = vmatprep.subr.mxu0 0.0
    %250 = vmatpush1.msra.mxu0 0.0
    %251 = vmatprep.subr.mxu0 0.0
    %252 = vmatpush1.msra.mxu0 0.0
    %253 = vmatprep.subr.mxu0 0.0
    %254 = vmatpush1.msra.mxu0 0.0
    %255 = vmatprep.subr.mxu0 0.0
    %256 = vmatpush1.msra.mxu0 0.0
    %257 = vmatprep.subr.mxu0 0.0
    %258 = vmatpush1.msra.mxu0 0.0
    %259 = vmatprep.subr.mxu0 0.0
    %260 = vmatpush1.msra.mxu0 0.0
    %261 = vmatprep.subr.mxu0 0.0
    %262 = vmatpush1.msra.mxu0 0.0
    %263 = vmatprep.subr.mxu0 0.0
    %264 = vmatpush1.msra.mxu0 0.0
    %265 = vmatprep.subr.mxu0 0.0
    %266 = vmatpush1.msra.mxu0 0.0
    %267 = vmatprep.subr.mxu0 0.0
    %268 = vmatpush1.msra.mxu0 0.0
    %269 = vmatprep.subr.mxu0 0.0
    %270 = vmatpush1.msra.mxu0 0.0
    %271 = vmatprep.subr.mxu0 0.0
    %272 = vmatpush1.msra.mxu0 0.0
    %273 = vmatprep.subr.mxu0 0.0
    %274 = vmatpush1.msra.mxu0 0.0
    %275 = vmatprep.subr.mxu0 0.0
    %276 = vmatpush1.msra.mxu0 0.0
    %277 = vmatprep.subr.mxu0 0.0
    %278 = vmatpush1.msra.mxu0 0.0
    %279 = vmatprep.subr.mxu0 0.0
    %280 = vmatpush1.msra.mxu0 0.0
    %281 = vmatprep.subr.mxu0 0.0
    %282 = vmatpush1.msra.mxu0 0.0
    %283 = vmatprep.mubr.f32.mxu0 0.0
    %284 = vmatmul.mubr.f32.gmra.mrb[0].mxu0 %v172
    %v285 = vpop.f32.mrb[0].mxu0
    %v286 = vadd.f32 0.0, %v285
    %v287 = vpop.f32.mrb[0].mxu0
    %288 = vmatprep.mubr.f32.mxu0 0.0
    %289 = vmatmul.mubr.f32.gmra.mrb[0].mxu0 %v175
    %v290 = vpop.f32.mrb[0].mxu0
    %v291 = vadd.f32 0.0, %v290
    %v292 = vpop.f32.mrb[0].mxu0
    %293 = vmatprep.mubr.f32.mxu0 0.0
    %294 = vmatmul.mubr.f32.gmra.mrb[0].mxu0 %v178
    %v295 = vpop.f32.mrb[0].mxu0
    %v296 = vadd.f32 0.0, %v295
    %v297 = vpop.f32.mrb[0].mxu0
    %298 = vmatprep.mubr.f32.mxu0 0.0
    %299 = vmatmul.mubr.f32.gmra.mrb[0].mxu0 %v181
    %v300 = vpop.f32.mrb[0].mxu0
    %v301 = vadd.f32 0.0, %v300
    %v302 = vpop.f32.mrb[0].mxu0
    %303 = vmatprep.mubr.f32.mxu0 0.0
    %304 = vmatmul.mubr.f32.gmra.mrb[0].mxu0 %v184
    %v305 = vpop.f32.mrb[0].mxu0
    %v306 = vadd.f32 0.0, %v305
    %v307 = vpop.f32.mrb[0].mxu0
    %308 = vmatprep.mubr.f32.mxu0 0.0
    %309 = vmatmul.mubr.f32.gmra.mrb[0].mxu0 %v187
    %v310 = vpop.f32.mrb[0].mxu0
    %v311 = vadd.f32 0.0, %v310
    %v312 = vpop.f32.mrb[0].mxu0
    %313 = vmatprep.mubr.f32.mxu0 0.0
    %314 = vmatmul.mubr.f32.gmra.mrb[0].mxu0 %v190
    %v315 = vpop.f32.mrb[0].mxu0
    %v316 = vadd.f32 0.0, %v315
    %v317 = vpop.f32.mrb[0].mxu0
    %318 = vmatprep.mubr.f32.mxu0 0.0
    %319 = vmatmul.mubr.f32.gmra.mrb[0].mxu0 %v193
    %v320 = vpop.f32.mrb[0].mxu0
    %v321 = vadd.f32 0.0, %v320
    %v322 = vpop.f32.mrb[0].mxu0
    %323 = vmatprep.mubr.f32.mxu0 0.0
    %324 = vmatmul.mubr.f32.gmra.mrb[0].mxu0 %v196
    %v325 = vpop.f32.mrb[0].mxu0
    %v326 = vadd.f32 0.0, %v325
    %v327 = vpop.f32.mrb[0].mxu0
    %328 = vmatprep.mubr.f32.mxu0 0.0
    %329 = vmatmul.mubr.f32.gmra.mrb[0].mxu0 %v199
    %v330 = vpop.f32.mrb[0].mxu0
    %v331 = vadd.f32 0.0, %v330
    %v332 = vpop.f32.mrb[0].mxu0
    %333 = vmatprep.mubr.f32.mxu0 0.0
    %334 = vmatmul.mubr.f32.gmra.mrb[0].mxu0 %v202
    %v335 = vpop.f32.mrb[0].mxu0
    %v336 = vadd.f32 0.0, %v335
    %v337 = vpop.f32.mrb[0].mxu0
    %338 = vmatprep.mubr.f32.mxu0 0.0
    %339 = vmatmul.mubr.f32.gmra.mrb[0].mxu0 %v205
    %v340 = vpop.f32.mrb[0].mxu0
    %v341 = vadd.f32 0.0, %v340
    %v342 = vpop.f32.mrb[0].mxu0
    %343 = vmatprep.mubr.f32.mxu0 0.0
    %344 = vmatmul.mubr.f32.gmra.mrb[0].mxu0 %v208
    %v345 = vpop.f32.mrb[0].mxu0
    %v346 = vadd.f32 0.0, %v345
    %v347 = vpop.f32.mrb[0].mxu0
    %348 = vmatprep.mubr.f32.mxu0 0.0
    %349 = vmatmul.mubr.f32.gmra.mrb[0].mxu0 %v211
    %v350 = vpop.f32.mrb[0].mxu0
    %v351 = vadd.f32 0.0, %v350
    %v352 = vpop.f32.mrb[0].mxu0
    %353 = vmatprep.mubr.f32.mxu0 0.0
    %354 = vmatmul.mubr.f32.gmra.mrb[0].mxu0 %v214
    %v355 = vpop.f32.mrb[0].mxu0
    %v356 = vadd.f32 0.0, %v355
    %v357 = vpop.f32.mrb[0].mxu0
    %358 = vmatprep.mubr.f32.mxu0 0.0
    %359 = vmatmul.mubr.f32.gmra.mrb[0].mxu0 %v217
    %v360 = vpop.f32.mrb[0].mxu0
    %v361 = vadd.f32 0.0, %v360
    %v362 = vpop.f32.mrb[0].mxu0
    %363 = vdwg.mxu0
    %v364 = vpack.c.bf16 %v291, %v286
    %v365 = vpack.c.bf16 %v301, %v296
    %v366 = vpack.c.bf16 %v311, %v306
    %v367 = vpack.c.bf16 %v321, %v316
    %v368 = vpack.c.bf16 %v331, %v326
    %v369 = vpack.c.bf16 %v341, %v336
    %v370 = vpack.c.bf16 %v351, %v346
    %v371 = vpack.c.bf16 %v361, %v356
    %v380 = vunpack.c.l.b16 %v364
    %v381 = vunpack.c.h.b16 %v364
    %v382 = vunpack.c.l.b16 %v365
    %v383 = vunpack.c.h.b16 %v365
    %v384 = vunpack.c.l.b16 %v366
    %v385 = vunpack.c.h.b16 %v366
    %v386 = vunpack.c.l.b16 %v367
    %v387 = vunpack.c.h.b16 %v367
    %v388 = vunpack.c.l.b16 %v368
    %v389 = vunpack.c.h.b16 %v368
    %v390 = vunpack.c.l.b16 %v369
    %v391 = vunpack.c.h.b16 %v369
    %v392 = vunpack.c.l.b16 %v370
    %v393 = vunpack.c.h.b16 %v370
    %v394 = vunpack.c.l.b16 %v371
    %v395 = vunpack.c.h.b16 %v371
    %v396 = vpack.c.b16 %v380, %v380
    %v397 = vpack.c.b16 %v381, %v381
    %v398 = vpack.c.b16 %v382, %v382
    %v399 = vpack.c.b16 %v383, %v383
    %v400 = vpack.c.b16 %v384, %v384
    %v401 = vpack.c.b16 %v385, %v385
    %v402 = vpack.c.b16 %v386, %v386
    %v403 = vpack.c.b16 %v387, %v387
    %v404 = vpack.c.b16 %v388, %v388
    %v405 = vpack.c.b16 %v389, %v389
    %v406 = vpack.c.b16 %v390, %v390
    %v407 = vpack.c.b16 %v391, %v391
    %v408 = vpack.c.b16 %v392, %v392
    %v409 = vpack.c.b16 %v393, %v393
    %v410 = vpack.c.b16 %v394, %v394
    %v411 = vpack.c.b16 %v395, %v395
    %vm428 = vcmask 125952
    %429 = vst.msk [vmem:[#allocation2] sm:$0xf] %vm428, %v396
    %430 = vst.msk [vmem:[#allocation2 + $0x4] sm:$0xf] %vm428, %v397
    %431 = vst.msk [vmem:[#allocation2 + $0x8] sm:$0xf] %vm428, %v398
    %432 = vst.msk [vmem:[#allocation2 + $0xc] sm:$0xf] %vm428, %v399
    %433 = vst.msk [vmem:[#allocation2 + $0x10] sm:$0xf] %vm428, %v400
    %434 = vst.msk [vmem:[#allocation2 + $0x14] sm:$0xf] %vm428, %v401
    %435 = vst.msk [vmem:[#allocation2 + $0x18] sm:$0xf] %vm428, %v402
    %436 = vst.msk [vmem:[#allocation2 + $0x1c] sm:$0xf] %vm428, %v403
    %437 = vst.msk [vmem:[#allocation2 + $0x20] sm:$0xf] %vm428, %v404
    %438 = vst.msk [vmem:[#allocation2 + $0x24] sm:$0xf] %vm428, %v405
    %439 = vst.msk [vmem:[#allocation2 + $0x28] sm:$0xf] %vm428, %v406
    %440 = vst.msk [vmem:[#allocation2 + $0x2c] sm:$0xf] %vm428, %v407
    %441 = vst.msk [vmem:[#allocation2 + $0x30] sm:$0xf] %vm428, %v408
    %442 = vst.msk [vmem:[#allocation2 + $0x34] sm:$0xf] %vm428, %v409
    %443 = vst.msk [vmem:[#allocation2 + $0x38] sm:$0xf] %vm428, %v410
    %444 = vst.msk [vmem:[#allocation2 + $0x3c] sm:$0xf] %vm428, %v411
    // Predicated region
    $region14: #{tpu_custom_call.1} parent=1 // pred_check
      _
    $region15: #{tpu_custom_call.1} parent=1 // pred_check_branch
      %446 = sbr.rel (0) target = $region17
    $region16: #{tpu_custom_call.1} parent=1 // pred_region
      %s448 = ssub.s32 1024, 1024
      %449 = vsyncadd [#allocation3], %s448
      %s450 = sshll.u32 [#allocation2], 4
      %s451 = int_to_ptr.vmem [resolvable:$true] %s450
      %456 = dma.vmem_to_hbm [thread:$0]  %s451, 1024, %s3, [#allocation3], 64, 64, 4
    $region17: #{tpu_custom_call.1} parent=1 // pred_fallthru
      _
    // Predicated region
    $region18: #{tpu_custom_call.1} parent=1 // pred_check
      _
    $region19: #{tpu_custom_call.1} parent=1 // pred_check_branch
      %458 = sbr.rel (0) target = $region21
    $region20: #{tpu_custom_call.1} parent=1 // pred_region
      %459 = dma.done [#allocation3], 1024
    $region21: #{tpu_custom_call.1} parent=1 // pred_fallthru
      _
    %460 = vsyncpa [#allocation3], 1

</llo_original>
